<compile_context>
chip_gen: v6e
topology: v6e:2x2x1
jax: 0.10.0
libtpu: 0.0.40
codegen_flags: <defaults>
</compile_context>

<pallas_src>
import functools
import math

import numpy as np
import jax
import jax.numpy as jnp
from jax import lax
from jax.experimental import pallas as pl
from jax.experimental.pallas import tpu as pltpu


# --------------------------------------------------------------------------
# Fused kernel:  layer0 (mean+concat+relu) -> layer1 (mean+concat)
#                -> L2 normalize -> pred Linear
# --------------------------------------------------------------------------
def fused_graphsage_kernel(x0_ref, avg_ref, w0_ref, w1_ref, wp_ref, bp_ref,
                           out_ref, *, tn, compute_dtype):
    f32 = jnp.float32
    cdt = compute_dtype

    # ---- Layer 0: one matmul; mean + concat([neigh@W, self@Wself]) are folded
    # into the packed input / block weight.  ReLU after concat == ReLU per half.
    h0 = jnp.dot(x0_ref[...], w0_ref[...], preferred_element_type=f32)
    h0 = jnp.maximum(h0, 0.0).astype(cdt)                  # (mt, 2H)

    # ---- Layer 1: neighbor mean on the MXU via constant averaging matrix.
    neigh1 = jnp.dot(avg_ref[...], h0, preferred_element_type=f32).astype(cdt)  # (tn, 2H)
    self1 = h0[0:tn, :]                                    # sublane-aligned (tn % 8 == 0)

    # concat at a 256-lane boundary (pure vreg placement), then ONE wide matmul
    # against the block-diagonal W1 -> concat([neigh1@w1n, self1@w1s]).
    x1 = jnp.concatenate([neigh1, self1], axis=-1)         # (tn, 4H)
    out1 = jnp.dot(x1, w1_ref[...], preferred_element_type=f32)  # (tn, 2*out_dim) f32

    # ---- L2 normalize (F.normalize):  1/max(||x||,1e-12) == rsqrt(max(||x||^2,1e-24))
    sumsq = jnp.sum(out1 * out1, axis=-1, keepdims=True)
    xnorm = out1 * lax.rsqrt(jnp.maximum(sumsq, 1e-24))

    # ---- pred Linear (weights zero-padded to a lane-dense 128-wide slab)
    logits = jnp.dot(xnorm.astype(cdt), wp_ref[...],
                     preferred_element_type=f32) + bp_ref[...]
    out_ref[...] = logits.astype(out_ref.dtype)


# --------------------------------------------------------------------------
# Forward wrapper (mirrors GraphSAGE.forward, agg_type='mean', concat=True)
# --------------------------------------------------------------------------
def graphsage_forward(feats, start_nodes, adj_list, num_sample_list, params,
                      *, use_bf16=True, node_tile=8):
    n0 = len(start_nodes)
    assert len(num_sample_list) == 2, "GraphSAGE module has exactly two SAGE layers"
    ns_rev = list(reversed(num_sample_list))
    ns0, ns1 = ns_rev[0], ns_rev[1]          # fan-out aggregated by layer 0 / layer 1
    m0 = n0 * (ns1 + 1)                      # middle-frontier size (un-padded)

    (w0n, w0s), (w1n, w1s) = params["layers"]
    wp, bp = params["pred"]
    in_dim = w0n.shape[0]
    hidden = w0n.shape[1]
    out_dim = w1n.shape[1]
    num_class = wp.shape[1]
    kpad = max(128, ((num_class + 127) // 128) * 128)      # lane-dense logits slab

    # --- node-axis tiling (rows padded to multiples of 8 => aligned slices/stores)
    TN = max(8, ((node_tile + 7) // 8) * 8)
    n0p = ((n0 + TN - 1) // TN) * TN
    ntiles = n0p // TN
    mt = TN * (ns1 + 1)                      # per-tile middle-frontier rows (8-aligned)
    K0 = (ns0 + 1) * in_dim

    cdt = jnp.bfloat16 if use_bf16 else jnp.float32

    # --- static (trace-time) index bookkeeping: padded, tile-major row order ---
    rows, valid = [], []
    for t in range(ntiles):
        for r in range(mt):
            if r < TN:                       # start-node self rows
                j = t * TN + r
                p = j if j < n0 else -1
            else:                            # neighbor rows, node-major, ns1 per node
                jl, s = divmod(r - TN, ns1)
                j = t * TN + jl
                p = (n0 + ns1 * j + s) if j < n0 else -1
            if p < 0:                        # padding row
                rows.append([0] * (ns0 + 1)); valid.append(0.0)
            else:                            # [neigh_0..neigh_{ns0-1}, self] frontier rows
                rows.append([m0 + ns0 * p + c for c in range(ns0)] + [p]); valid.append(1.0)
    gidx = jnp.asarray(np.asarray(rows, np.int32))                 # (ntiles*mt, ns0+1)
    vmask = jnp.asarray(np.asarray(valid, np.float32))[:, None]

    # --- gather frontier features once and pack them (XLA glue).
    # TODO(synk): fold this gather into the kernel via PrefetchScalarGridSpec
    # (indices in SMEM + per-row DMA) for production frontier sizes.
    adj_last = jnp.asarray(adj_list[-1], jnp.int32)
    node_idx = adj_last[gidx]                                       # (ntiles*mt, ns0+1)
    x0 = (feats[node_idx].reshape(ntiles * mt, K0) * vmask).astype(cdt)

    # layer-0 block weight (mean folded in):
    #   x0 @ W0 == concat([mean(neigh) @ w0n, self @ w0s], -1)
    W0 = jnp.zeros((K0, 2 * hidden), jnp.float32)
    for s in range(ns0):
        W0 = W0.at[s * in_dim:(s + 1) * in_dim, :hidden].set(w0n / ns0)
    W0 = W0.at[ns0 * in_dim:, hidden:].set(w0s)

    # constant averaging matrix (identical for every node tile):
    #   (A @ h0)[j] = mean over the ns1 neighbor rows of start node j
    A_np = np.zeros((TN, mt), np.float32)
    for j in range(TN):
        A_np[j, TN + ns1 * j: TN + ns1 * (j + 1)] = 1.0 / ns1
    A = jnp.asarray(A_np)

    # layer-1 block-diagonal weight:
    #   concat([neigh1, self1]) @ W1 == concat([neigh1 @ w1n, self1 @ w1s], -1)
    W1 = jnp.zeros((4 * hidden, 2 * out_dim), jnp.float32)
    W1 = W1.at[:2 * hidden, :out_dim].set(w1n)
    W1 = W1.at[2 * hidden:, out_dim:].set(w1s)

    # lane-dense prediction weights / bias
    wp_pad = jnp.zeros((2 * out_dim, kpad), jnp.float32).at[:, :num_class].set(wp)
    bp_pad = jnp.zeros((1, kpad), jnp.float32).at[0, :num_class].set(bp)

    kernel = functools.partial(fused_graphsage_kernel, tn=TN, compute_dtype=cdt)
    logits_pad = pl.pallas_call(
        kernel,
        out_shape=jax.ShapeDtypeStruct((n0p, kpad), jnp.float32),
        grid=(ntiles,),
        in_specs=[
            pl.BlockSpec((mt, K0), lambda i: (i, 0)),                # packed frontier tile
            pl.BlockSpec((TN, mt), lambda i: (0, 0)),                # averaging matrix
            pl.BlockSpec((K0, 2 * hidden), lambda i: (0, 0)),        # layer-0 block weight
            pl.BlockSpec((4 * hidden, 2 * out_dim), lambda i: (0, 0)),  # layer-1 block weight
            pl.BlockSpec((2 * out_dim, kpad), lambda i: (0, 0)),     # pred weight (padded)
            pl.BlockSpec((1, kpad), lambda i: (0, 0)),               # pred bias (padded)
        ],
        out_specs=pl.BlockSpec((TN, kpad), lambda i: (i, 0)),
        compiler_params=pltpu.CompilerParams(
            dimension_semantics=("parallel",)),
    )(x0, A.astype(cdt), W0.astype(cdt), W1.astype(cdt), wp_pad.astype(cdt), bp_pad)
    return logits_pad[:n0, :num_class]


# --------------------------------------------------------------------------
# Pure-JAX reference (direct port of the PyTorch forward) for the self-check
# --------------------------------------------------------------------------
def graphsage_reference(feats, start_nodes, adj_list, num_sample_list, params):
    HI = lax.Precision.HIGHEST
    num_start_node = len(start_nodes)
    index_neighbor_self = []
    for each in num_sample_list:
        index_neighbor_self.insert(0, each * num_start_node)
        num_start_node = each * num_start_node + num_start_node
    output = feats[adj_list[-1]]
    ns_rev = list(reversed(num_sample_list))
    for i, num_sample in enumerate(ns_rev):
        cut = index_neighbor_self[i]
        neighbor = output[-cut:]
        self_f = output[:-cut]
        w, sw = params["layers"][i]
        in_ch = w.shape[0]
        self_f = self_f.reshape(-1, in_ch)
        neigh_mean = neighbor.reshape(-1, num_sample, in_ch).mean(axis=1)
        out = jnp.concatenate([jnp.dot(neigh_mean, w, precision=HI),
                               jnp.dot(self_f, sw, precision=HI)], axis=-1)
        if i == 0:
            out = jnp.maximum(out, 0.0)
        output = out
    norm = jnp.sqrt(jnp.sum(output * output, axis=-1, keepdims=True))
    output = output / jnp.maximum(norm, 1e-12)
    wp, bp = params["pred"]
    return jnp.dot(output, wp, precision=HI) + bp


# --------------------------------------------------------------------------
# Parameter init (deterministic glorot-uniform, like the PyTorch module)
# --------------------------------------------------------------------------
def glorot(key, shape):
    fan_in, fan_out = shape
    limit = math.sqrt(6.0 / (fan_in + fan_out))
    return jax.random.uniform(key, shape, jnp.float32, -limit, limit)


# --------------------------------------------------------------------------
if __name__ == "__main__":
    in_dim, out_dim, num_class, hidden = 16, 64, 41, 128

    # graph sampling setup: 4 start nodes, 2-hop sampling (3, 2) neighbors
    N0 = 4
    num_sample_list = [3, 2]
    num_nodes = 64

    key = jax.random.PRNGKey(0)
    k_feat, k_adj, k0, k1, k2, k3, k4 = jax.random.split(key, 7)

    feats = jax.random.normal(k_feat, (num_nodes, in_dim), jnp.float32)
    start_nodes = list(range(N0))

    # total nodes in the deepest frontier = 4 -> 16 -> 48
    total = N0
    for s in num_sample_list:
        total = total * s + total
    adj_last = jax.random.randint(k_adj, (total,), 0, num_nodes)
    adj_list = [adj_last]

    params = {
        "layers": [
            # SAGELayer(in_dim, 128): weight, self_weight  (concat -> 256 out)
            (glorot(k0, (in_dim, hidden)), glorot(k1, (in_dim, hidden))),
            # SAGELayer(256, out_dim): weight, self_weight (concat -> 128 out)
            (glorot(k2, (2 * hidden, out_dim)), glorot(k3, (2 * hidden, out_dim))),
        ],
        # pred_layer: Linear(out_dim*2, num_class)
        "pred": (glorot(k4, (2 * out_dim, num_class)),
                 jnp.zeros((num_class,), jnp.float32)),
    }

    ref = graphsage_reference(feats, start_nodes, adj_list,
                              list(num_sample_list), params)

    # ---- f32 path: tight(er) self-check of the kernel math
    fwd_f32 = jax.jit(functools.partial(graphsage_forward,
                                        start_nodes=start_nodes,
                                        num_sample_list=list(num_sample_list),
                                        use_bf16=False))
    out_f32 = fwd_f32(feats, adj_list=adj_list, params=params)
    jax.block_until_ready(out_f32)
    assert out_f32.shape == (N0, num_class)
    err32 = float(jnp.max(jnp.abs(out_f32 - ref)))
    assert err32 < 5e-3, f"f32 path mismatch vs reference: {err32}"

    # ---- bf16 MXU path (recommended production config): looser tolerance
    fwd_bf16 = jax.jit(functools.partial(graphsage_forward,
                                         start_nodes=start_nodes,
                                         num_sample_list=list(num_sample_list),
                                         use_bf16=True))
    out_bf16 = fwd_bf16(feats, adj_list=adj_list, params=params)
    jax.block_until_ready(out_bf16)
    assert out_bf16.shape == (N0, num_class)
    err16 = float(jnp.max(jnp.abs(out_bf16 - ref)))
    assert err16 < 3e-2, f"bf16 path mismatch vs reference: {err16}"

    print("KERNEL_OK")
</pallas_src>

<mosaic_0001>
module attributes {stable_mosaic.version = 11 : i64} {
  func.func @fused_graphsage_kernel(%arg0: i32, %arg1: memref<32x48xf32, #tpu.memory_space<vmem>>, %arg2: memref<8x32xf32, #tpu.memory_space<vmem>>, %arg3: memref<48x256xf32, #tpu.memory_space<vmem>>, %arg4: memref<512x128xf32, #tpu.memory_space<vmem>>, %arg5: memref<128x128xf32, #tpu.memory_space<vmem>>, %arg6: memref<1x128xf32, #tpu.memory_space<vmem>>, %arg7: memref<8x128xf32, #tpu.memory_space<vmem>>) attributes {dimension_semantics = [#tpu.dimension_semantics<parallel>], iteration_bounds = array<i64: 1>, scalar_prefetch = 0 : i64, scratch_operands = 0 : i64, tpu.core_type = #tpu.core_type<tc>, window_params = [{transform_indices = @transform_0, window_bounds = array<i64: 32, 48>}, {pipeline_mode = #tpu.pipeline_mode<synchronous>, transform_indices = @transform_1, window_bounds = array<i64: 8, 32>}, {pipeline_mode = #tpu.pipeline_mode<synchronous>, transform_indices = @transform_2, window_bounds = array<i64: 48, 256>}, {pipeline_mode = #tpu.pipeline_mode<synchronous>, transform_indices = @transform_3, window_bounds = array<i64: 512, 128>}, {pipeline_mode = #tpu.pipeline_mode<synchronous>, transform_indices = @transform_4, window_bounds = array<i64: 128, 128>}, {pipeline_mode = #tpu.pipeline_mode<synchronous>, transform_indices = @transform_5, window_bounds = array<i64: 1, 128>}, {transform_indices = @transform_6, window_bounds = array<i64: 8, 128>}]} {
    %c0 = arith.constant 0 : index
    %c0_0 = arith.constant 0 : index
    %0 = vector.load %arg1[%c0, %c0_0] : memref<32x48xf32, #tpu.memory_space<vmem>>, vector<32x48xf32>
    %c0_1 = arith.constant 0 : index
    %c0_2 = arith.constant 0 : index
    %1 = vector.load %arg3[%c0_1, %c0_2] : memref<48x256xf32, #tpu.memory_space<vmem>>, vector<48x256xf32>
    %cst = arith.constant dense<0.000000e+00> : vector<32x256xf32>
    %2 = tpu.matmul %0, %1, %cst {dimension_numbers = #tpu.dot_dimension_numbers<[1], [0], [0], [1], [0, 0, 1, 1], [], []>} : vector<32x48xf32>, vector<48x256xf32>, vector<32x256xf32> -> vector<32x256xf32>
    %cst_3 = arith.constant 0.000000e+00 : f32
    %3 = vector.broadcast %cst_3 : f32 to vector<32x256xf32>
    %4 = arith.maximumf %2, %3 : vector<32x256xf32>
    %c0_4 = arith.constant 0 : index
    %c0_5 = arith.constant 0 : index
    %5 = vector.load %arg2[%c0_4, %c0_5] : memref<8x32xf32, #tpu.memory_space<vmem>>, vector<8x32xf32>
    %cst_6 = arith.constant dense<0.000000e+00> : vector<8x256xf32>
    %6 = tpu.matmul %5, %4, %cst_6 {dimension_numbers = #tpu.dot_dimension_numbers<[1], [0], [0], [1], [0, 0, 1, 1], [], []>} : vector<8x32xf32>, vector<32x256xf32>, vector<8x256xf32> -> vector<8x256xf32>
    %7 = vector.extract_strided_slice %4 {offsets = [0, 0], sizes = [8, 256], strides = [1, 1]} : vector<32x256xf32> to vector<8x256xf32>
    %8 = tpu.concatenate %6, %7 in 1 : vector<8x256xf32>, vector<8x256xf32> -> vector<8x512xf32>
    %c0_7 = arith.constant 0 : index
    %c0_8 = arith.constant 0 : index
    %9 = vector.load %arg4[%c0_7, %c0_8] : memref<512x128xf32, #tpu.memory_space<vmem>>, vector<512x128xf32>
    %cst_9 = arith.constant dense<0.000000e+00> : vector<8x128xf32>
    %10 = tpu.matmul %8, %9, %cst_9 {dimension_numbers = #tpu.dot_dimension_numbers<[1], [0], [0], [1], [0, 0, 1, 1], [], []>} : vector<8x512xf32>, vector<512x128xf32>, vector<8x128xf32> -> vector<8x128xf32>
    %11 = arith.mulf %10, %10 : vector<8x128xf32>
    %cst_10 = arith.constant dense<0.000000e+00> : vector<8xf32>
    %12 = vector.multi_reduction <add>, %11, %cst_10 [1] : vector<8x128xf32> to vector<8xf32>
    %13 = vector.shape_cast %12 : vector<8xf32> to vector<8x1xf32>
    %cst_11 = arith.constant 1.000000e-24 : f32
    %14 = vector.broadcast %cst_11 : f32 to vector<8x1xf32>
    %15 = arith.maximumf %13, %14 : vector<8x1xf32>
    %16 = math.rsqrt %15 : vector<8x1xf32>
    %17 = vector.broadcast %16 : vector<8x1xf32> to vector<8x128xf32>
    %18 = arith.mulf %10, %17 : vector<8x128xf32>
    %c0_12 = arith.constant 0 : index
    %c0_13 = arith.constant 0 : index
    %19 = vector.load %arg5[%c0_12, %c0_13] : memref<128x128xf32, #tpu.memory_space<vmem>>, vector<128x128xf32>
    %cst_14 = arith.constant dense<0.000000e+00> : vector<8x128xf32>
    %20 = tpu.matmul %18, %19, %cst_14 {dimension_numbers = #tpu.dot_dimension_numbers<[1], [0], [0], [1], [0, 0, 1, 1], [], []>} : vector<8x128xf32>, vector<128x128xf32>, vector<8x128xf32> -> vector<8x128xf32>
    %c0_15 = arith.constant 0 : index
    %c0_16 = arith.constant 0 : index
    %21 = vector.load %arg6[%c0_15, %c0_16] : memref<1x128xf32, #tpu.memory_space<vmem>>, vector<1x128xf32>
    %22 = vector.broadcast %21 : vector<1x128xf32> to vector<8x128xf32>
    %23 = arith.addf %20, %22 : vector<8x128xf32>
    %c0_17 = arith.constant 0 : index
    %c0_18 = arith.constant 0 : index
    %24 = vector.load %arg7[%c0_17, %c0_18] : memref<8x128xf32, #tpu.memory_space<vmem>>, vector<8x128xf32>
    tpu.vector_store %arg7[%c0_17, %c0_18], %23 {strides = array<i32>} : memref<8x128xf32, #tpu.memory_space<vmem>>, vector<8x128xf32>,
    return
  }
  func.func @transform_0(%arg0: i32) -> (i32, i32) {
    %c0_i32 = arith.constant 0 : i32
    %c0_i32_0 = arith.constant 0 : i32
    return %arg0, %c0_i32 : i32, i32
  }
  func.func @transform_1(%arg0: i32) -> (i32, i32) {
    %c0_i32 = arith.constant 0 : i32
    %c0_i32_0 = arith.constant 0 : i32
    %c0_i32_1 = arith.constant 0 : i32
    return %c0_i32, %c0_i32_0 : i32, i32
  }
  func.func @transform_2(%arg0: i32) -> (i32, i32) {
    %c0_i32 = arith.constant 0 : i32
    %c0_i32_0 = arith.constant 0 : i32
    %c0_i32_1 = arith.constant 0 : i32
    return %c0_i32, %c0_i32_0 : i32, i32
  }
  func.func @transform_3(%arg0: i32) -> (i32, i32) {
    %c0_i32 = arith.constant 0 : i32
    %c0_i32_0 = arith.constant 0 : i32
    %c0_i32_1 = arith.constant 0 : i32
    return %c0_i32, %c0_i32_0 : i32, i32
  }
  func.func @transform_4(%arg0: i32) -> (i32, i32) {
    %c0_i32 = arith.constant 0 : i32
    %c0_i32_0 = arith.constant 0 : i32
    %c0_i32_1 = arith.constant 0 : i32
    return %c0_i32, %c0_i32_0 : i32, i32
  }
  func.func @transform_5(%arg0: i32) -> (i32, i32) {
    %c0_i32 = arith.constant 0 : i32
    %c0_i32_0 = arith.constant 0 : i32
    %c0_i32_1 = arith.constant 0 : i32
    return %c0_i32, %c0_i32_0 : i32, i32
  }
  func.func @transform_6(%arg0: i32) -> (i32, i32) {
    %c0_i32 = arith.constant 0 : i32
    %c0_i32_0 = arith.constant 0 : i32
    return %arg0, %c0_i32 : i32, i32
  }
}

</mosaic_0001>

<llo_original>
// kernel: graphsage_forward.1
$region0: #{graphsage_forward.1}
  #allocation0 [shape = 'u32[]', space=smem, size = 0x4, offset = 0x4, fixed_abs, tag = 'smem constant byte address 0x4 - core index']
  #allocation1 [shape = 'u32[144,128]{1,0:T(1,128)}', space=vmem, size = 0x12000, scoped, tag = 'internal scratch']
  %s0 = inlined_call_operand.vmem [shape: f32[32,48], index: 0, kind: input, shape index: {}]
  %s1 = inlined_call_operand.vmem [shape: f32[8,32], index: 1, kind: input, shape index: {}]
  %s2 = inlined_call_operand.vmem [shape: f32[48,256], index: 2, kind: input, shape index: {}]
  %s3 = inlined_call_operand.vmem [shape: f32[512,128], index: 3, kind: input, shape index: {}]
  %s4 = inlined_call_operand.vmem [shape: f32[128,128], index: 4, kind: input, shape index: {}]
  %s5 = inlined_call_operand.vmem [shape: f32[1,128], index: 5, kind: input, shape index: {}]
  %s6 = inlined_call_operand.vmem [shape: f32[8,128], index: 6, kind: output, shape index: {}]
  %s7 = sld [smem:[#allocation0]]
  $region34: #{graphsage_forward.1} parent=0
    _
  %s9 = ssub.s32 1, %s7
  %s10 = scalar_select 0, %s9, %s7
  // Predicated region
  $region2: #{graphsage_forward.1} parent=0 // pred_check
    _
  $region3: #{graphsage_forward.1} parent=0 // pred_check_branch
    %12 = sbr.rel (0) target = $region5
  $region4: #{graphsage_forward.1} parent=0 // pred_region
    _
  $region5: #{graphsage_forward.1} parent=0 // pred_fallthru
    _
  // Predicated region
  $region6: #{graphsage_forward.1} parent=0 // pred_check
    _
  $region7: #{graphsage_forward.1} parent=0 // pred_check_branch
    %14 = sbr.rel (0) target = $region9
  $region8: #{graphsage_forward.1} parent=0 // pred_region
    _
  $region9: #{graphsage_forward.1} parent=0 // pred_fallthru
    _
  // Predicated region
  $region10: #{graphsage_forward.1} parent=0 // pred_check
    _
  $region11: #{graphsage_forward.1} parent=0 // pred_check_branch
    %16 = sbr.rel (0) target = $region13
  $region12: #{graphsage_forward.1} parent=0 // pred_region
    _
  $region13: #{graphsage_forward.1} parent=0 // pred_fallthru
    _
  // Predicated region
  $region14: #{graphsage_forward.1} parent=0 // pred_check
    _
  $region15: #{graphsage_forward.1} parent=0 // pred_check_branch
    %18 = sbr.rel (0) target = $region17
  $region16: #{graphsage_forward.1} parent=0 // pred_region
    _
  $region17: #{graphsage_forward.1} parent=0 // pred_fallthru
    _
  // Predicated region
  $region18: #{graphsage_forward.1} parent=0 // pred_check
    _
  $region19: #{graphsage_forward.1} parent=0 // pred_check_branch
    %20 = sbr.rel (0) target = $region21
  $region20: #{graphsage_forward.1} parent=0 // pred_region
    _
  $region21: #{graphsage_forward.1} parent=0 // pred_fallthru
    _
  // Predicated region
  $region22: #{graphsage_forward.1} parent=0 // pred_check
    _
  $region23: #{graphsage_forward.1} parent=0 // pred_check_branch
    %22 = sbr.rel (0) target = $region25
  $region24: #{graphsage_forward.1} parent=0 // pred_region
    _
  $region25: #{graphsage_forward.1} parent=0 // pred_fallthru
    _
  %v23 = vld [vmem:[%s0] sm:$0xff]
  %v24 = vld [vmem:[%s0 + $0x8] sm:$0xff]
  %v25 = vld [vmem:[%s0 + $0x10] sm:$0xff]
  %v26 = vld [vmem:[%s0 + $0x18] sm:$0xff]
  %v27 = vld [vmem:[%s2] sm:$0xff]
  %v28 = vld [vmem:[%s2 + $0x8] sm:$0xff]
  %v29 = vld [vmem:[%s2 + $0x10] sm:$0xff]
  %v30 = vld [vmem:[%s2 + $0x18] sm:$0xff]
  %v31 = vld [vmem:[%s2 + $0x20] sm:$0xff]
  %v32 = vld [vmem:[%s2 + $0x28] sm:$0xff]
  %v33 = vld [vmem:[%s2 + $0x30] sm:$0xff]
  %v34 = vld [vmem:[%s2 + $0x38] sm:$0xff]
  %v35 = vld [vmem:[%s2 + $0x40] sm:$0xff]
  %v36 = vld [vmem:[%s2 + $0x48] sm:$0xff]
  %v37 = vld [vmem:[%s2 + $0x50] sm:$0xff]
  %v38 = vld [vmem:[%s2 + $0x58] sm:$0xff]
  %vm39 = vcmask 392192
  %v41 = vsel %vm39, %v23, 0
  %v44 = vsel %vm39, %v24, 0
  %v47 = vsel %vm39, %v25, 0
  %v50 = vsel %vm39, %v26, 0
  %52 = vmatprep.subr.mxu0 0.0
  %53 = vmatpush1.msra.mxu0 0.0
  %54 = vmatprep.subr.mxu0 0.0
  %55 = vmatpush1.msra.mxu0 0.0
  %56 = vmatprep.subr.mxu0 0.0
  %57 = vmatpush1.msra.mxu0 0.0
  %58 = vmatprep.subr.mxu0 0.0
  %59 = vmatpush1.msra.mxu0 0.0
  %60 = vmatprep.subr.mxu0 0.0
  %61 = vmatpush1.msra.mxu0 0.0
  %62 = vmatprep.subr.mxu0 0.0
  %63 = vmatpush1.msra.mxu0 0.0
  %64 = vmatprep.subr.mxu0 0.0
  %65 = vmatpush1.msra.mxu0 0.0
  %66 = vmatprep.subr.mxu0 0.0
  %67 = vmatpush1.msra.mxu0 0.0
  %68 = vmatprep.subr.mxu0 0.0
  %69 = vmatpush1.msra.mxu0 0.0
  %70 = vmatprep.subr.mxu0 0.0
  %71 = vmatpush1.msra.mxu0 0.0
  %72 = vmatprep.subr.mxu0 %v38
  %73 = vmatpush1.msra.mxu0 %v37
  %74 = vmatprep.subr.mxu0 %v36
  %75 = vmatpush1.msra.mxu0 %v35
  %76 = vmatprep.subr.mxu0 %v34
  %77 = vmatpush1.msra.mxu0 %v33
  %78 = vmatprep.subr.mxu0 %v32
  %79 = vmatpush1.msra.mxu0 %v31
  %80 = vmatprep.subr.mxu0 %v30
  %81 = vmatpush1.msra.mxu0 %v29
  %82 = vmatprep.subr.mxu0 %v28
  %83 = vmatpush1.msra.mxu0 %v27
  %84 = vmatprep.subr.mxu0 0.0
  %85 = vmatpush2.msra.mxu0 0.0
  %86 = vmatprep.subr.mxu0 0.0
  %87 = vmatpush2.msra.mxu0 0.0
  %88 = vmatprep.subr.mxu0 0.0
  %89 = vmatpush2.msra.mxu0 0.0
  %90 = vmatprep.subr.mxu0 0.0
  %91 = vmatpush2.msra.mxu0 0.0
  %92 = vmatprep.subr.mxu0 0.0
  %93 = vmatpush2.msra.mxu0 0.0
  %94 = vmatprep.subr.mxu0 0.0
  %95 = vmatpush2.msra.mxu0 0.0
  %96 = vmatprep.subr.mxu0 0.0
  %97 = vmatpush2.msra.mxu0 0.0
  %98 = vmatprep.subr.mxu0 0.0
  %99 = vmatpush2.msra.mxu0 0.0
  %100 = vmatprep.subr.mxu0 0.0
  %101 = vmatpush2.msra.mxu0 0.0
  %102 = vmatprep.subr.mxu0 0.0
  %103 = vmatpush2.msra.mxu0 0.0
  %104 = vmatprep.subr.mxu0 0.0
  %105 = vmatpush2.msra.mxu0 0.0
  %106 = vmatprep.subr.mxu0 0.0
  %107 = vmatpush2.msra.mxu0 0.0
  %108 = vmatprep.subr.mxu0 0.0
  %109 = vmatpush2.msra.mxu0 0.0
  %110 = vmatprep.subr.mxu0 0.0
  %111 = vmatpush2.msra.mxu0 0.0
  %112 = vmatprep.subr.mxu0 0.0
  %113 = vmatpush2.msra.mxu0 0.0
  %114 = vmatprep.subr.mxu0 0.0
  %115 = vmatpush2.msra.mxu0 0.0
  %116 = vmatprep.mubr.f32.mxu0 0.0
  %117 = vmatmul.mubr.f32.gmra.mxu0 %v41
  %v118 = vpop.f32.mrf.mxu0
  %v119 = vadd.f32 0.0, %v118
  %v120 = vpop.f32.mrf.mxu0
  %v121 = vadd.f32 0.0, %v120
  %122 = vmatprep.mubr.f32.mxu0 0.0
  %123 = vmatmul.mubr.f32.gmra.mxu0 %v44
  %v124 = vpop.f32.mrf.mxu0
  %v125 = vadd.f32 0.0, %v124
  %v126 = vpop.f32.mrf.mxu0
  %v127 = vadd.f32 0.0, %v126
  %128 = vmatprep.mubr.f32.mxu0 0.0
  %129 = vmatmul.mubr.f32.gmra.mxu0 %v47
  %v130 = vpop.f32.mrf.mxu0
  %v131 = vadd.f32 0.0, %v130
  %v132 = vpop.f32.mrf.mxu0
  %v133 = vadd.f32 0.0, %v132
  %134 = vmatprep.mubr.f32.mxu0 0.0
  %135 = vmatmul.mubr.f32.gmra.mxu0 %v50
  %v136 = vpop.f32.mrf.mxu0
  %v137 = vadd.f32 0.0, %v136
  %v138 = vpop.f32.mrf.mxu0
  %v139 = vadd.f32 0.0, %v138
  %140 = vdwg.mxu0
  %v141 = vmax.f32 %v119, 0.0
  %v142 = vmax.f32 %v121, 0.0
  %v143 = vmax.f32 %v125, 0.0
  %v144 = vmax.f32 %v127, 0.0
  %v145 = vmax.f32 %v131, 0.0
  %v146 = vmax.f32 %v133, 0.0
  %v147 = vmax.f32 %v137, 0.0
  %v148 = vmax.f32 %v139, 0.0
  %v149 = vld [vmem:[%s1] sm:$0xff]
  %vm150 = vcmask 261120
  %v152 = vsel %vm150, %v149, 0
  %154 = vmatprep.subr.mxu0 0.0
  %155 = vmatpush1.msra.mxu0 0.0
  %156 = vmatprep.subr.mxu0 0.0
  %157 = vmatpush1.msra.mxu0 0.0
  %158 = vmatprep.subr.mxu0 0.0
  %159 = vmatpush1.msra.mxu0 0.0
  %160 = vmatprep.subr.mxu0 0.0
  %161 = vmatpush1.msra.mxu0 0.0
  %162 = vmatprep.subr.mxu0 0.0
  %163 = vmatpush1.msra.mxu0 0.0
  %164 = vmatprep.subr.mxu0 0.0
  %165 = vmatpush1.msra.mxu0 0.0
  %166 = vmatprep.subr.mxu0 0.0
  %167 = vmatpush1.msra.mxu0 0.0
  %168 = vmatprep.subr.mxu0 0.0
  %169 = vmatpush1.msra.mxu0 0.0
  %170 = vmatprep.subr.mxu0 0.0
  %171 = vmatpush1.msra.mxu0 0.0
  %172 = vmatprep.subr.mxu0 0.0
  %173 = vmatpush1.msra.mxu0 0.0
  %174 = vmatprep.subr.mxu0 0.0
  %175 = vmatpush1.msra.mxu0 0.0
  %176 = vmatprep.subr.mxu0 0.0
  %177 = vmatpush1.msra.mxu0 0.0
  %178 = vmatprep.subr.mxu0 %v148
  %179 = vmatpush1.msra.mxu0 %v147
  %180 = vmatprep.subr.mxu0 %v146
  %181 = vmatpush1.msra.mxu0 %v145
  %182 = vmatprep.subr.mxu0 %v144
  %183 = vmatpush1.msra.mxu0 %v143
  %184 = vmatprep.subr.mxu0 %v142
  %185 = vmatpush1.msra.mxu0 %v141
  %186 = vmatprep.subr.mxu0 0.0
  %187 = vmatpush2.msra.mxu0 0.0
  %188 = vmatprep.subr.mxu0 0.0
  %189 = vmatpush2.msra.mxu0 0.0
  %190 = vmatprep.subr.mxu0 0.0
  %191 = vmatpush2.msra.mxu0 0.0
  %192 = vmatprep.subr.mxu0 0.0
  %193 = vmatpush2.msra.mxu0 0.0
  %194 = vmatprep.subr.mxu0 0.0
  %195 = vmatpush2.msra.mxu0 0.0
  %196 = vmatprep.subr.mxu0 0.0
  %197 = vmatpush2.msra.mxu0 0.0
  %198 = vmatprep.subr.mxu0 0.0
  %199 = vmatpush2.msra.mxu0 0.0
  %200 = vmatprep.subr.mxu0 0.0
  %201 = vmatpush2.msra.mxu0 0.0
  %202 = vmatprep.subr.mxu0 0.0
  %203 = vmatpush2.msra.mxu0 0.0
  %204 = vmatprep.subr.mxu0 0.0
  %205 = vmatpush2.msra.mxu0 0.0
  %206 = vmatprep.subr.mxu0 0.0
  %207 = vmatpush2.msra.mxu0 0.0
  %208 = vmatprep.subr.mxu0 0.0
  %209 = vmatpush2.msra.mxu0 0.0
  %210 = vmatprep.subr.mxu0 0.0
  %211 = vmatpush2.msra.mxu0 0.0
  %212 = vmatprep.subr.mxu0 0.0
  %213 = vmatpush2.msra.mxu0 0.0
  %214 = vmatprep.subr.mxu0 0.0
  %215 = vmatpush2.msra.mxu0 0.0
  %216 = vmatprep.subr.mxu0 0.0
  %217 = vmatpush2.msra.mxu0 0.0
  %218 = vmatprep.mubr.f32.mxu0 0.0
  %219 = vmatmul.mubr.f32.gmra.mxu0 %v152
  %v220 = vpop.f32.mrf.mxu0
  %v221 = vadd.f32 0.0, %v220
  %v222 = vpop.f32.mrf.mxu0
  %v223 = vadd.f32 0.0, %v222
  %224 = vdwg.mxu0
  %v225 = vld [vmem:[%s3] sm:$0xff]
  %v226 = vld [vmem:[%s3 + $0x8] sm:$0xff]
  %v227 = vld [vmem:[%s3 + $0x10] sm:$0xff]
  %v228 = vld [vmem:[%s3 + $0x18] sm:$0xff]
  %v229 = vld [vmem:[%s3 + $0x20] sm:$0xff]
  %v230 = vld [vmem:[%s3 + $0x28] sm:$0xff]
  %v231 = vld [vmem:[%s3 + $0x30] sm:$0xff]
  %v232 = vld [vmem:[%s3 + $0x38] sm:$0xff]
  %v233 = vld [vmem:[%s3 + $0x40] sm:$0xff]
  %v234 = vld [vmem:[%s3 + $0x48] sm:$0xff]
  %v235 = vld [vmem:[%s3 + $0x50] sm:$0xff]
  %v236 = vld [vmem:[%s3 + $0x58] sm:$0xff]
  %v237 = vld [vmem:[%s3 + $0x60] sm:$0xff]
  %v238 = vld [vmem:[%s3 + $0x68] sm:$0xff]
  %v239 = vld [vmem:[%s3 + $0x70] sm:$0xff]
  %v240 = vld [vmem:[%s3 + $0x78] sm:$0xff]
  %v241 = vld [vmem:[%s3 + $0x80] sm:$0xff]
  %v242 = vld [vmem:[%s3 + $0x88] sm:$0xff]
  %v243 = vld [vmem:[%s3 + $0x90] sm:$0xff]
  %v244 = vld [vmem:[%s3 + $0x98] sm:$0xff]
  %v245 = vld [vmem:[%s3 + $0xa0] sm:$0xff]
  %v246 = vld [vmem:[%s3 + $0xa8] sm:$0xff]
  %v247 = vld [vmem:[%s3 + $0xb0] sm:$0xff]
  %v248 = vld [vmem:[%s3 + $0xb8] sm:$0xff]
  %v249 = vld [vmem:[%s3 + $0xc0] sm:$0xff]
  %v250 = vld [vmem:[%s3 + $0xc8] sm:$0xff]
  %v251 = vld [vmem:[%s3 + $0xd0] sm:$0xff]
  %v252 = vld [vmem:[%s3 + $0xd8] sm:$0xff]
  %v253 = vld [vmem:[%s3 + $0xe0] sm:$0xff]
  %v254 = vld [vmem:[%s3 + $0xe8] sm:$0xff]
  %v255 = vld [vmem:[%s3 + $0xf0] sm:$0xff]
  %v256 = vld [vmem:[%s3 + $0xf8] sm:$0xff]
  %v257 = vld [vmem:[%s3 + $0x100] sm:$0xff]
  %v258 = vld [vmem:[%s3 + $0x108] sm:$0xff]
  %v259 = vld [vmem:[%s3 + $0x110] sm:$0xff]
  %v260 = vld [vmem:[%s3 + $0x118] sm:$0xff]
  %v261 = vld [vmem:[%s3 + $0x120] sm:$0xff]
  %v262 = vld [vmem:[%s3 + $0x128] sm:$0xff]
  %v263 = vld [vmem:[%s3 + $0x130] sm:$0xff]
  %v264 = vld [vmem:[%s3 + $0x138] sm:$0xff]
  %v265 = vld [vmem:[%s3 + $0x140] sm:$0xff]
  %v266 = vld [vmem:[%s3 + $0x148] sm:$0xff]
  %v267 = vld [vmem:[%s3 + $0x150] sm:$0xff]
  %v268 = vld [vmem:[%s3 + $0x158] sm:$0xff]
  %v269 = vld [vmem:[%s3 + $0x160] sm:$0xff]
  %v270 = vld [vmem:[%s3 + $0x168] sm:$0xff]
  %v271 = vld [vmem:[%s3 + $0x170] sm:$0xff]
  %v272 = vld [vmem:[%s3 + $0x178] sm:$0xff]
  %v273 = vld [vmem:[%s3 + $0x180] sm:$0xff]
  %v274 = vld [vmem:[%s3 + $0x188] sm:$0xff]
  %v275 = vld [vmem:[%s3 + $0x190] sm:$0xff]
  %v276 = vld [vmem:[%s3 + $0x198] sm:$0xff]
  %v277 = vld [vmem:[%s3 + $0x1a0] sm:$0xff]
  %v278 = vld [vmem:[%s3 + $0x1a8] sm:$0xff]
  %v279 = vld [vmem:[%s3 + $0x1b0] sm:$0xff]
  %v280 = vld [vmem:[%s3 + $0x1b8] sm:$0xff]
  %v281 = vld [vmem:[%s3 + $0x1c0] sm:$0xff]
  %v282 = vld [vmem:[%s3 + $0x1c8] sm:$0xff]
  %v283 = vld [vmem:[%s3 + $0x1d0] sm:$0xff]
  %v284 = vld [vmem:[%s3 + $0x1d8] sm:$0xff]
  %v285 = vld [vmem:[%s3 + $0x1e0] sm:$0xff]
  %v286 = vld [vmem:[%s3 + $0x1e8] sm:$0xff]
  %v287 = vld [vmem:[%s3 + $0x1f0] sm:$0xff]
  %v288 = vld [vmem:[%s3 + $0x1f8] sm:$0xff]
  %289 = vmatprep.subr.mxu0 0.0
  %290 = vmatpush1.msra.mxu0 %v240
  %291 = vmatprep.subr.mxu0 0.0
  %292 = vmatpush1.msra.mxu0 %v239
  %293 = vmatprep.subr.mxu0 0.0
  %294 = vmatpush1.msra.mxu0 %v238
  %295 = vmatprep.subr.mxu0 0.0
  %296 = vmatpush1.msra.mxu0 %v237
  %297 = vmatprep.subr.mxu0 0.0
  %298 = vmatpush1.msra.mxu0 %v236
  %299 = vmatprep.subr.mxu0 0.0
  %300 = vmatpush1.msra.mxu0 %v235
  %301 = vmatprep.subr.mxu0 0.0
  %302 = vmatpush1.msra.mxu0 %v234
  %303 = vmatprep.subr.mxu0 0.0
  %304 = vmatpush1.msra.mxu0 %v233
  %305 = vmatprep.subr.mxu0 0.0
  %306 = vmatpush1.msra.mxu0 %v232
  %307 = vmatprep.subr.mxu0 0.0
  %308 = vmatpush1.msra.mxu0 %v231
  %309 = vmatprep.subr.mxu0 0.0
  %310 = vmatpush1.msra.mxu0 %v230
  %311 = vmatprep.subr.mxu0 0.0
  %312 = vmatpush1.msra.mxu0 %v229
  %313 = vmatprep.subr.mxu0 0.0
  %314 = vmatpush1.msra.mxu0 %v228
  %315 = vmatprep.subr.mxu0 0.0
  %316 = vmatpush1.msra.mxu0 %v227
  %317 = vmatprep.subr.mxu0 0.0
  %318 = vmatpush1.msra.mxu0 %v226
  %319 = vmatprep.subr.mxu0 0.0
  %320 = vmatpush1.msra.mxu0 %v225
  %321 = vmatprep.subr.mxu0 0.0
  %322 = vmatpush2.msra.mxu0 %v256
  %323 = vmatprep.subr.mxu0 0.0
  %324 = vmatpush2.msra.mxu0 %v255
  %325 = vmatprep.subr.mxu0 0.0
  %326 = vmatpush2.msra.mxu0 %v254
  %327 = vmatprep.subr.mxu0 0.0
  %328 = vmatpush2.msra.mxu0 %v253
  %329 = vmatprep.subr.mxu0 0.0
  %330 = vmatpush2.msra.mxu0 %v252
  %331 = vmatprep.subr.mxu0 0.0
  %332 = vmatpush2.msra.mxu0 %v251
  %333 = vmatprep.subr.mxu0 0.0
  %334 = vmatpush2.msra.mxu0 %v250
  %335 = vmatprep.subr.mxu0 0.0
  %336 = vmatpush2.msra.mxu0 %v249
  %337 = vmatprep.subr.mxu0 0.0
  %338 = vmatpush2.msra.mxu0 %v248
  %339 = vmatprep.subr.mxu0 0.0
  %340 = vmatpush2.msra.mxu0 %v247
  %341 = vmatprep.subr.mxu0 0.0
  %342 = vmatpush2.msra.mxu0 %v246
  %343 = vmatprep.subr.mxu0 0.0
  %344 = vmatpush2.msra.mxu0 %v245
  %345 = vmatprep.subr.mxu0 0.0
  %346 = vmatpush2.msra.mxu0 %v244
  %347 = vmatprep.subr.mxu0 0.0
  %348 = vmatpush2.msra.mxu0 %v243
  %349 = vmatprep.subr.mxu0 0.0
  %350 = vmatpush2.msra.mxu0 %v242
  %351 = vmatprep.subr.mxu0 0.0
  %352 = vmatpush2.msra.mxu0 %v241
  %353 = vmatprep.mubr.f32.mxu0 %v223
  %354 = vmatmul.mubr.f32.gmra.mxu0 %v221
  %v355 = vpop.f32.mrf.mxu0
  %v356 = vadd.f32 0.0, %v355
  %v357 = vpop.f32.mrf.mxu0
  %358 = vdwg.mxu0
  %359 = vmatprep.subr.mxu0 0.0
  %360 = vmatpush1.msra.mxu0 %v272
  %361 = vmatprep.subr.mxu0 0.0
  %362 = vmatpush1.msra.mxu0 %v271
  %363 = vmatprep.subr.mxu0 0.0
  %364 = vmatpush1.msra.mxu0 %v270
  %365 = vmatprep.subr.mxu0 0.0
  %366 = vmatpush1.msra.mxu0 %v269
  %367 = vmatprep.subr.mxu0 0.0
  %368 = vmatpush1.msra.mxu0 %v268
  %369 = vmatprep.subr.mxu0 0.0
  %370 = vmatpush1.msra.mxu0 %v267
  %371 = vmatprep.subr.mxu0 0.0
  %372 = vmatpush1.msra.mxu0 %v266
  %373 = vmatprep.subr.mxu0 0.0
  %374 = vmatpush1.msra.mxu0 %v265
  %375 = vmatprep.subr.mxu0 0.0
  %376 = vmatpush1.msra.mxu0 %v264
  %377 = vmatprep.subr.mxu0 0.0
  %378 = vmatpush1.msra.mxu0 %v263
  %379 = vmatprep.subr.mxu0 0.0
  %380 = vmatpush1.msra.mxu0 %v262
  %381 = vmatprep.subr.mxu0 0.0
  %382 = vmatpush1.msra.mxu0 %v261
  %383 = vmatprep.subr.mxu0 0.0
  %384 = vmatpush1.msra.mxu0 %v260
  %385 = vmatprep.subr.mxu0 0.0
  %386 = vmatpush1.msra.mxu0 %v259
  %387 = vmatprep.subr.mxu0 0.0
  %388 = vmatpush1.msra.mxu0 %v258
  %389 = vmatprep.subr.mxu0 0.0
  %390 = vmatpush1.msra.mxu0 %v257
  %391 = vmatprep.subr.mxu0 0.0
  %392 = vmatpush2.msra.mxu0 %v288
  %393 = vmatprep.subr.mxu0 0.0
  %394 = vmatpush2.msra.mxu0 %v287
  %395 = vmatprep.subr.mxu0 0.0
  %396 = vmatpush2.msra.mxu0 %v286
  %397 = vmatprep.subr.mxu0 0.0
  %398 = vmatpush2.msra.mxu0 %v285
  %399 = vmatprep.subr.mxu0 0.0
  %400 = vmatpush2.msra.mxu0 %v284
  %401 = vmatprep.subr.mxu0 0.0
  %402 = vmatpush2.msra.mxu0 %v283
  %403 = vmatprep.subr.mxu0 0.0
  %404 = vmatpush2.msra.mxu0 %v282
  %405 = vmatprep.subr.mxu0 0.0
  %406 = vmatpush2.msra.mxu0 %v281
  %407 = vmatprep.subr.mxu0 0.0
  %408 = vmatpush2.msra.mxu0 %v280
  %409 = vmatprep.subr.mxu0 0.0
  %410 = vmatpush2.msra.mxu0 %v279
  %411 = vmatprep.subr.mxu0 0.0
  %412 = vmatpush2.msra.mxu0 %v278
  %413 = vmatprep.subr.mxu0 0.0
  %414 = vmatpush2.msra.mxu0 %v277
  %415 = vmatprep.subr.mxu0 0.0
  %416 = vmatpush2.msra.mxu0 %v276
  %417 = vmatprep.subr.mxu0 0.0
  %418 = vmatpush2.msra.mxu0 %v275
  %419 = vmatprep.subr.mxu0 0.0
  %420 = vmatpush2.msra.mxu0 %v274
  %421 = vmatprep.subr.mxu0 0.0
  %422 = vmatpush2.msra.mxu0 %v273
  %423 = vmatprep.mubr.f32.mxu0 %v142
  %424 = vmatmul.mubr.f32.gmra.mxu0 %v141
  %v425 = vpop.f32.mrf.mxu0
  %v426 = vadd.f32 %v356, %v425
  %v427 = vpop.f32.mrf.mxu0
  %428 = vdwg.mxu0
  %v429 = vmul.f32 %v426, %v426
  %430 = vadd.xlane.f32.xlu0 %v429
  %v431 = vpop.xlane.xlu0 %430
  %v432 = vmax.f32 %v431, 1e-24
  %v433 = vrsqrt.pop %v432
  %v434 = vmul.f32 %v426, %v433
  %v435 = vld [vmem:[%s4] sm:$0xff]
  %v436 = vld [vmem:[%s4 + $0x8] sm:$0xff]
  %v437 = vld [vmem:[%s4 + $0x10] sm:$0xff]
  %v438 = vld [vmem:[%s4 + $0x18] sm:$0xff]
  %v439 = vld [vmem:[%s4 + $0x20] sm:$0xff]
  %v440 = vld [vmem:[%s4 + $0x28] sm:$0xff]
  %v441 = vld [vmem:[%s4 + $0x30] sm:$0xff]
  %v442 = vld [vmem:[%s4 + $0x38] sm:$0xff]
  %v443 = vld [vmem:[%s4 + $0x40] sm:$0xff]
  %v444 = vld [vmem:[%s4 + $0x48] sm:$0xff]
  %v445 = vld [vmem:[%s4 + $0x50] sm:$0xff]
  %v446 = vld [vmem:[%s4 + $0x58] sm:$0xff]
  %v447 = vld [vmem:[%s4 + $0x60] sm:$0xff]
  %v448 = vld [vmem:[%s4 + $0x68] sm:$0xff]
  %v449 = vld [vmem:[%s4 + $0x70] sm:$0xff]
  %v450 = vld [vmem:[%s4 + $0x78] sm:$0xff]
  %v451 = vld [vmem:[%s5] sm:$0x1]
  %v453 = vlaneseq
  %v454 = vshrl.u32 %v453, 7
  %v455 = vsub.s32 0, %v454
  %v456 = vrot.slane %v451, %v455
  %458 = vmatprep.subr.mxu0 0.0
  %459 = vmatpush1.msra.mxu0 %v450
  %460 = vmatprep.subr.mxu0 0.0
  %461 = vmatpush1.msra.mxu0 %v449
  %462 = vmatprep.subr.mxu0 0.0
  %463 = vmatpush1.msra.mxu0 %v448
  %464 = vmatprep.subr.mxu0 0.0
  %465 = vmatpush1.msra.mxu0 %v447
  %466 = vmatprep.subr.mxu0 0.0
  %467 = vmatpush1.msra.mxu0 %v446
  %468 = vmatprep.subr.mxu0 0.0
  %469 = vmatpush1.msra.mxu0 %v445
  %470 = vmatprep.subr.mxu0 0.0
  %471 = vmatpush1.msra.mxu0 %v444
  %472 = vmatprep.subr.mxu0 0.0
  %473 = vmatpush1.msra.mxu0 %v443
  %474 = vmatprep.subr.mxu0 0.0
  %475 = vmatpush1.msra.mxu0 %v442
  %476 = vmatprep.subr.mxu0 0.0
  %477 = vmatpush1.msra.mxu0 %v441
  %478 = vmatprep.subr.mxu0 0.0
  %479 = vmatpush1.msra.mxu0 %v440
  %480 = vmatprep.subr.mxu0 0.0
  %481 = vmatpush1.msra.mxu0 %v439
  %482 = vmatprep.subr.mxu0 0.0
  %483 = vmatpush1.msra.mxu0 %v438
  %484 = vmatprep.subr.mxu0 0.0
  %485 = vmatpush1.msra.mxu0 %v437
  %486 = vmatprep.subr.mxu0 0.0
  %487 = vmatpush1.msra.mxu0 %v436
  %488 = vmatprep.subr.mxu0 0.0
  %489 = vmatpush1.msra.mxu0 %v435
  %490 = vmatprep.subr.mxu0 0.0
  %491 = vmatpush2.msra.mxu0 0.0
  %492 = vmatprep.subr.mxu0 0.0
  %493 = vmatpush2.msra.mxu0 0.0
  %494 = vmatprep.subr.mxu0 0.0
  %495 = vmatpush2.msra.mxu0 0.0
  %496 = vmatprep.subr.mxu0 0.0
  %497 = vmatpush2.msra.mxu0 0.0
  %498 = vmatprep.subr.mxu0 0.0
  %499 = vmatpush2.msra.mxu0 0.0
  %500 = vmatprep.subr.mxu0 0.0
  %501 = vmatpush2.msra.mxu0 0.0
  %502 = vmatprep.subr.mxu0 0.0
  %503 = vmatpush2.msra.mxu0 0.0
  %504 = vmatprep.subr.mxu0 0.0
  %505 = vmatpush2.msra.mxu0 0.0
  %506 = vmatprep.subr.mxu0 0.0
  %507 = vmatpush2.msra.mxu0 0.0
  %508 = vmatprep.subr.mxu0 0.0
  %509 = vmatpush2.msra.mxu0 0.0
  %510 = vmatprep.subr.mxu0 0.0
  %511 = vmatpush2.msra.mxu0 0.0
  %512 = vmatprep.subr.mxu0 0.0
  %513 = vmatpush2.msra.mxu0 0.0
  %514 = vmatprep.subr.mxu0 0.0
  %515 = vmatpush2.msra.mxu0 0.0
  %516 = vmatprep.subr.mxu0 0.0
  %517 = vmatpush2.msra.mxu0 0.0
  %518 = vmatprep.subr.mxu0 0.0
  %519 = vmatpush2.msra.mxu0 0.0
  %520 = vmatprep.subr.mxu0 0.0
  %521 = vmatpush2.msra.mxu0 0.0
  %522 = vmatprep.mubr.f32.mxu0 0.0
  %523 = vmatmul.mubr.f32.gmra.mxu0 %v434
  %v524 = vpop.f32.mrf.mxu0
  %v525 = vadd.f32 %v456, %v524
  %v526 = vpop.f32.mrf.mxu0
  %527 = vdwg.mxu0
  %528 = vst [vmem:[%s6] sm:$0xff] %v525
  // Predicated region
  $region26: #{graphsage_forward.1} parent=0 // pred_check
    _
  $region27: #{graphsage_forward.1} parent=0 // pred_check_branch
    %530 = sbr.rel (0) target = $region29
  $region28: #{graphsage_forward.1} parent=0 // pred_region
    _
  $region29: #{graphsage_forward.1} parent=0 // pred_fallthru
    _
  // Predicated region
  $region30: #{graphsage_forward.1} parent=0 // pred_check
    _
  $region31: #{graphsage_forward.1} parent=0 // pred_check_branch
    %532 = sbr.rel (0) target = $region33
  $region32: #{graphsage_forward.1} parent=0 // pred_region
    _
  $region33: #{graphsage_forward.1} parent=0 // pred_fallthru
    _

</llo_original>
